<compile_context>
chip_gen: v7x
topology: tpu7x:2x2x1
jax: 0.10.0
libtpu: 0.0.40
codegen_flags: <defaults>
</compile_context>

<pallas_src>
import functools
import math

import jax
import jax.numpy as jnp
from jax import lax
from jax.experimental import pallas as pl
from jax.experimental.pallas import tpu as pltpu


# ---------------------------------------------------------------------------
# Generation-aware VMEM planning (queried once at import time).
# ---------------------------------------------------------------------------
def _query_vmem_capacity_bytes():
    try:
        info = pltpu.get_tpu_info()
        cap = getattr(info, "vmem_capacity_bytes", None)
        if cap:
            return int(cap)
    except Exception:
        pass
    return 64 * 1024 * 1024  # conservative fallback (v7x per-TC VMEM)


_VMEM_CAPACITY = _query_vmem_capacity_bytes()
# Scoped limit requested from Mosaic: ~5/8 of physical, capped at 48 MiB.
#   v7x (64 MiB physical)  -> 40 MiB ; v5e/v6e (128 MiB) -> 48 MiB
# (the default scoped limit is only 16 MiB on v5e / 32 MiB on v6e & v7x).
_VMEM_LIMIT_BYTES = int(min(_VMEM_CAPACITY * 5 // 8, 48 * 1024 * 1024))
# Budget for the double-buffered x/out blocks; ~25% headroom is left for the
# stats blocks, per-feature rows and compiler scratch.
_BLOCK_BUDGET_BYTES = _VMEM_LIMIT_BYTES * 3 // 4
_MAX_ROW_TILE = 32768
_MAX_COL_TILE = 4096


# ---------------------------------------------------------------------------
# Kernel
# ---------------------------------------------------------------------------
def _custom_bn_kernel(x_ref, mean_ref, inv_std_ref, out_ref, stats_ref,
                      *, n_rows, tile_rows):
    i = pl.program_id(0)

    x = x_ref[...]                        # (tile_rows, col_tile), native dtype
    xf = x.astype(jnp.float32)
    mean = mean_ref[...]                  # (1, col_tile) f32, broadcasts
    inv_std = inv_std_ref[...]            # (1, col_tile) f32

    # Elementwise normalize (sqrt/clamp/divide hoisted to the wrapper).
    out_ref[...] = ((xf - mean) * inv_std).astype(out_ref.dtype)

    # Column sums for the running-statistics update (one writeback per step).
    def write_stats(vals):
        s = jnp.sum(vals, axis=0, keepdims=True)            # (1, col_tile)
        s2 = jnp.sum(vals * vals, axis=0, keepdims=True)    # (1, col_tile)
        stats_ref[...] = jnp.concatenate([s, s2], axis=0)[None]  # (1,2,col_tile)

    if n_rows % tile_rows == 0:
        write_stats(xf)
    else:
        last = pl.num_programs(0) - 1

        @pl.when(i != last)
        def _():
            write_stats(xf)

        @pl.when(i == last)
        def _():
            # Mask the ragged last row tile: rows past n_rows contain
            # unspecified pipeline padding and must not reach the sums.
            row = i * tile_rows + lax.broadcasted_iota(
                jnp.int32, (tile_rows, 1), 0)
            write_stats(jnp.where(row < n_rows, xf, jnp.float32(0.0)))


# ---------------------------------------------------------------------------
# Tiling helpers
# ---------------------------------------------------------------------------
def _choose_packing(nb_feats, n_elems):
    """Lane-dense column width: view x as (-1, n_cols) with n_cols a multiple
    of 128 so output stores are full-width vst instead of masked stores."""
    n_cols = math.lcm(nb_feats, 128)
    if n_cols <= 32768 and n_elems % n_cols == 0:
        return n_cols, n_cols // nb_feats
    # TODO(synk): pad the flattened array to a multiple of lcm(F,128) (zero pad
    # drops out of the sums) so shapes where lcm does not divide n_elems also
    # get lane-dense stores, once the extra pad pass is shown to be worth it.
    return nb_feats, 1


def _pick_col_tile(n_cols):
    if n_cols <= _MAX_COL_TILE or n_cols % 128 != 0:
        return n_cols
    for cand in range(_MAX_COL_TILE, 127, -128):
        if n_cols % cand == 0:
            return cand
    return n_cols


def _pick_row_tile(n_rows, col_tile, x_itemsize, out_itemsize):
    """Largest row tile whose double-buffered input+output blocks fit the
    per-step VMEM budget, rounded to the dtype sublane multiple."""
    sub = 8 * max(1, 4 // min(x_itemsize, out_itemsize))   # 8 f32 / 16 bf16 / 32 i8
    bytes_per_row = col_tile * (x_itemsize + out_itemsize) * 2   # x2 double buffer
    tile = _BLOCK_BUDGET_BYTES // max(bytes_per_row, 1)
    tile = int(min(tile, _MAX_ROW_TILE))
    tile -= tile % sub
    tile = max(tile, sub)
    if tile >= n_rows:
        # Whole row extent fits one block. Split into two roughly even blocks
        # so the "parallel" row axis can feed both v7x TensorCores.
        if n_rows >= 4 * sub:
            half = -(-n_rows // 2)
            half += (-half) % sub
            return min(half, n_rows)
        return n_rows
    return tile


# ---------------------------------------------------------------------------
# Forward
# ---------------------------------------------------------------------------
@functools.partial(jax.jit, static_argnames=("eps",))
def custom_bn_forward(x, mean, squared_mean, count, eps=1e-5):
    """Returns (output, new_mean, new_squared_mean, new_count)."""
    del eps  # mirrors PyTorch: eps is stored but unused in forward
    nb_feats = mean.shape[0]
    batch_size = x.shape[0]
    orig_shape = x.shape
    out_dtype = x.dtype
    n_elems = x.size

    # Grid-invariant per-feature stats, computed once in plain JAX (F-sized).
    mean_f = mean.astype(jnp.float32)
    sq_f = squared_mean.astype(jnp.float32)
    inv_std = 1.0 / jnp.sqrt(jnp.maximum(sq_f - mean_f * mean_f, jnp.float32(0.01)))

    # Lane-dense packing.
    n_cols, pack = _choose_packing(nb_feats, n_elems)
    if pack > 1:
        mean_row = jnp.tile(mean_f, pack)[None, :]        # (1, n_cols)
        inv_row = jnp.tile(inv_std, pack)[None, :]
    else:
        mean_row = mean_f[None, :]
        inv_row = inv_std[None, :]

    x2d = x.reshape(-1, n_cols)                           # native dtype view
    n_rows = x2d.shape[0]

    col_tile = _pick_col_tile(n_cols)
    num_col_tiles = n_cols // col_tile
    tile_rows = _pick_row_tile(n_rows, col_tile, x2d.dtype.itemsize,
                               jnp.dtype(out_dtype).itemsize)
    num_row_tiles = pl.cdiv(n_rows, tile_rows)

    kernel = functools.partial(_custom_bn_kernel,
                               n_rows=n_rows, tile_rows=tile_rows)

    xb = x2d.dtype.itemsize
    ob = jnp.dtype(out_dtype).itemsize
    cost = pl.CostEstimate(
        flops=6 * n_elems,
        transcendentals=0,
        bytes_accessed=n_elems * (xb + ob) + 8 * num_row_tiles * n_cols
        + 8 * n_cols)

    out2d, stats = pl.pallas_call(
        kernel,
        out_shape=(
            jax.ShapeDtypeStruct((n_rows, n_cols), out_dtype),
            jax.ShapeDtypeStruct((num_row_tiles, 2, n_cols), jnp.float32),
        ),
        grid_spec=pltpu.PrefetchScalarGridSpec(
            num_scalar_prefetch=0,
            grid=(num_row_tiles, num_col_tiles),
            in_specs=[
                pl.BlockSpec((tile_rows, col_tile), lambda i, j: (i, j)),
                pl.BlockSpec((1, col_tile), lambda i, j: (0, j)),
                pl.BlockSpec((1, col_tile), lambda i, j: (0, j)),
            ],
            out_specs=[
                pl.BlockSpec((tile_rows, col_tile), lambda i, j: (i, j)),
                pl.BlockSpec((1, 2, col_tile), lambda i, j: (i, 0, j)),
            ],
        ),
        compiler_params=pltpu.CompilerParams(
            dimension_semantics=("parallel", "parallel"),
            vmem_limit_bytes=_VMEM_LIMIT_BYTES),
        cost_estimate=cost,
    )(x2d, mean_row, inv_row)

    # Tiny cross-tile reduction + buffer rescaling in plain JAX.
    sum_cols = jnp.sum(stats[:, 0, :], axis=0)             # (n_cols,)
    sumsq_cols = jnp.sum(stats[:, 1, :], axis=0)
    if pack > 1:
        sum_feats = sum_cols.reshape(pack, nb_feats).sum(axis=0)
        sumsq_feats = sumsq_cols.reshape(pack, nb_feats).sum(axis=0)
    else:
        sum_feats = sum_cols
        sumsq_feats = sumsq_cols

    n_flat = n_elems // nb_feats                          # rows of x.view(-1, F)
    flat_mean = sum_feats / jnp.float32(n_flat)
    flat_sqmean = sumsq_feats / jnp.float32(n_flat)
    bsz = jnp.float32(batch_size)

    new_mean = (mean_f * count + bsz * flat_mean) / (count + bsz)
    new_sqmean = (sq_f * count + bsz * flat_sqmean) / (count + bsz)
    new_count = count + bsz

    return (out2d.reshape(orig_shape),
            new_mean.astype(mean.dtype),
            new_sqmean.astype(squared_mean.dtype),
            new_count)


# ---------------------------------------------------------------------------
# Reference + tests
# ---------------------------------------------------------------------------
def _reference(x, mean, squared_mean, count):
    nb_feats = mean.shape[0]
    bsz = x.shape[0]
    std = jnp.sqrt(jnp.maximum(squared_mean - mean ** 2, 0.01))
    out = (x - mean) / std
    flat = x.reshape(-1, nb_feats).astype(jnp.float32)
    new_mean = (mean * count + bsz * flat.mean(0)) / (count + bsz)
    new_sq = (squared_mean * count + bsz * (flat ** 2).mean(0)) / (count + bsz)
    return out, new_mean, new_sq, count + bsz


def _run_case(key, shape):
    nb_feats = shape[-1]
    x = jax.random.normal(key, shape, dtype=jnp.float32) * 2.0 + 0.5
    count = jnp.zeros((1,), jnp.float32)
    mean = jnp.zeros((nb_feats,), jnp.float32)
    squared_mean = jnp.ones((nb_feats,), jnp.float32)

    out, new_mean, new_sq, new_count = jax.block_until_ready(
        custom_bn_forward(x, mean, squared_mean, count))
    ref_out, ref_mean, ref_sq, ref_count = _reference(x, mean, squared_mean, count)

    assert jnp.allclose(out, ref_out, atol=1e-5, rtol=1e-5)
    assert jnp.allclose(new_mean, ref_mean, atol=1e-5, rtol=1e-5)
    assert jnp.allclose(new_sq, ref_sq, atol=1e-5, rtol=1e-5)
    assert jnp.allclose(new_count, ref_count)


if __name__ == "__main__":
    key = jax.random.PRNGKey(0)
    k0, k1, k2, k3 = jax.random.split(key, 4)

    # Primary small case implied by the module: 4-D activations, F = last dim.
    _run_case(k0, (2, 4, 16, 16))          # packed path (lcm(16,128)=128)

    # Multi-row-tile grid + ragged-last-tile mask + megacore split.
    _run_case(k1, (2500, 128))

    # Generalized lane packing: F=48 -> n_cols = lcm(48,128) = 384.
    _run_case(k2, (16, 48))

    # Fallback path (F does not pack cleanly): masked stores, still correct.
    _run_case(k3, (10, 50))

    print("KERNEL_OK")
</pallas_src>

<mosaic_0001>
module attributes {stable_mosaic.version = 11 : i64} {
  func.func @_custom_bn_kernel(%arg0: i32, %arg1: i32, %arg2: memref<16x128xf32, #tpu.memory_space<vmem>>, %arg3: memref<1x128xf32, #tpu.memory_space<vmem>>, %arg4: memref<1x128xf32, #tpu.memory_space<vmem>>, %arg5: memref<16x128xf32, #tpu.memory_space<vmem>>, %arg6: memref<1x2x128xf32, #tpu.memory_space<vmem>>) attributes {dimension_semantics = [#tpu.dimension_semantics<parallel>, #tpu.dimension_semantics<parallel>], iteration_bounds = array<i64: 1, 1>, scalar_prefetch = 0 : i64, scratch_operands = 0 : i64, tpu.core_type = #tpu.core_type<tc>, window_params = [{transform_indices = @transform_0, window_bounds = array<i64: 16, 128>}, {transform_indices = @transform_1, window_bounds = array<i64: 1, 128>}, {transform_indices = @transform_2, window_bounds = array<i64: 1, 128>}, {transform_indices = @transform_3, window_bounds = array<i64: 16, 128>}, {transform_indices = @transform_4, window_bounds = array<i64: 1, 2, 128>}]} {
    %c0 = arith.constant 0 : index
    %c0_0 = arith.constant 0 : index
    %0 = vector.load %arg2[%c0, %c0_0] : memref<16x128xf32, #tpu.memory_space<vmem>>, vector<16x128xf32>
    %c0_1 = arith.constant 0 : index
    %c0_2 = arith.constant 0 : index
    %1 = vector.load %arg3[%c0_1, %c0_2] : memref<1x128xf32, #tpu.memory_space<vmem>>, vector<1x128xf32>
    %c0_3 = arith.constant 0 : index
    %c0_4 = arith.constant 0 : index
    %2 = vector.load %arg4[%c0_3, %c0_4] : memref<1x128xf32, #tpu.memory_space<vmem>>, vector<1x128xf32>
    %3 = vector.broadcast %1 : vector<1x128xf32> to vector<16x128xf32>
    %4 = arith.subf %0, %3 : vector<16x128xf32>
    %5 = vector.broadcast %2 : vector<1x128xf32> to vector<16x128xf32>
    %6 = arith.mulf %4, %5 : vector<16x128xf32>
    %c0_5 = arith.constant 0 : index
    %c0_6 = arith.constant 0 : index
    %7 = vector.load %arg5[%c0_5, %c0_6] : memref<16x128xf32, #tpu.memory_space<vmem>>, vector<16x128xf32>
    tpu.vector_store %arg5[%c0_5, %c0_6], %6 {strides = array<i32>} : memref<16x128xf32, #tpu.memory_space<vmem>>, vector<16x128xf32>,
    %cst = arith.constant dense<0.000000e+00> : vector<128xf32>
    %8 = vector.multi_reduction <add>, %0, %cst [0] : vector<16x128xf32> to vector<128xf32>
    %9 = vector.shape_cast %8 : vector<128xf32> to vector<1x128xf32>
    %10 = arith.mulf %0, %0 : vector<16x128xf32>
    %cst_7 = arith.constant dense<0.000000e+00> : vector<128xf32>
    %11 = vector.multi_reduction <add>, %10, %cst_7 [0] : vector<16x128xf32> to vector<128xf32>
    %12 = vector.shape_cast %11 : vector<128xf32> to vector<1x128xf32>
    %13 = tpu.concatenate %9, %12 in 0 : vector<1x128xf32>, vector<1x128xf32> -> vector<2x128xf32>
    %14 = vector.shape_cast %13 : vector<2x128xf32> to vector<1x2x128xf32>
    %c0_8 = arith.constant 0 : index
    %c0_9 = arith.constant 0 : index
    %c0_10 = arith.constant 0 : index
    %15 = vector.load %arg6[%c0_8, %c0_9, %c0_10] : memref<1x2x128xf32, #tpu.memory_space<vmem>>, vector<1x2x128xf32>
    tpu.vector_store %arg6[%c0_8, %c0_9, %c0_10], %14 {strides = array<i32>} : memref<1x2x128xf32, #tpu.memory_space<vmem>>, vector<1x2x128xf32>,
    return
  }
  func.func @transform_0(%arg0: i32, %arg1: i32) -> (i32, i32) {
    %c0_i32 = arith.constant 0 : i32
    return %arg0, %arg1 : i32, i32
  }
  func.func @transform_1(%arg0: i32, %arg1: i32) -> (i32, i32) {
    %c0_i32 = arith.constant 0 : i32
    %c0_i32_0 = arith.constant 0 : i32
    return %c0_i32, %arg1 : i32, i32
  }
  func.func @transform_2(%arg0: i32, %arg1: i32) -> (i32, i32) {
    %c0_i32 = arith.constant 0 : i32
    %c0_i32_0 = arith.constant 0 : i32
    return %c0_i32, %arg1 : i32, i32
  }
  func.func @transform_3(%arg0: i32, %arg1: i32) -> (i32, i32) {
    %c0_i32 = arith.constant 0 : i32
    return %arg0, %arg1 : i32, i32
  }
  func.func @transform_4(%arg0: i32, %arg1: i32) -> (i32, i32, i32) {
    %c0_i32 = arith.constant 0 : i32
    %c0_i32_0 = arith.constant 0 : i32
    return %arg0, %c0_i32, %arg1 : i32, i32, i32
  }
}

</mosaic_0001>

<llo_original>
// kernel: tile.13
$region0: #{tile.13}
  #allocation0 [shape = 's32[1]{0}', space=sflag, size = 0x4, scoped, tag = 'scoped memory for tile.13']
  %s0 = inlined_call_operand.vmem [shape: f32[16], index: 0, kind: input, shape index: {}]
  %s1 = inlined_call_operand.vmem [shape: f32[8,16], index: 1, kind: output, shape index: {}]
  // Predicated region
  $region2: #{tile.13} parent=0 // pred_check
    _
  $region3: #{tile.13} parent=0 // pred_check_branch
    %3 = sbr.rel (0) target = $region5
  $region4: #{tile.13} parent=0 // pred_region
    _
  $region5: #{tile.13} parent=0 // pred_fallthru
    _
  %v4 = vld [vmem:[%s0] ss:$0 sm:$0xff]
  %5 = vst [vmem:[%s1] sm:$0xff] %v4

// kernel: tile.14
$region0: #{tile.14}
  %s0 = inlined_call_operand.vmem [shape: f32[8,16], index: 0, kind: input, shape index: {}]
  %s1 = inlined_call_operand.vmem [shape: f32[1,128], index: 1, kind: output, shape index: {}]
  $region1: #{tile.14} parent=0
    #allocation0 [shape = 'u8[4096]{0}', space=vmem, size = 0x1000, scoped, tag = 'scoped mem for output reshape']
    %v2 = vld [vmem:[%s0] sm:$0x1]
    %vm3 = vcmask 130048
    %4 = vst.msk [vmem:[#allocation0] sm:$0x1] %vm3, %v2
    %s5 = scalar_lea.vmem %s0, 7
    %v6 = vld [vmem:[%s5] sm:$0x1]
    %7 = vrot.lane.b32.xlu0 %v6, 112
    %v8 = vpop.permute.xlu0 %7
    %vm9 = vcmask 1048448
    %10 = vst.msk [vmem:[#allocation0] sm:$0x1] %vm9, %v8
    %s11 = scalar_lea.vmem %s0, 6
    %v12 = vld [vmem:[%s11] sm:$0x1]
    %13 = vrot.lane.b32.xlu0 %v12, 96
    %v14 = vpop.permute.xlu0 %13
    %vm15 = vcmask 917248
    %16 = vst.msk [vmem:[#allocation0] sm:$0x1] %vm15, %v14
    %s17 = scalar_lea.vmem %s0, 5
    %v18 = vld [vmem:[%s17] sm:$0x1]
    %19 = vrot.lane.b32.xlu0 %v18, 80
    %v20 = vpop.permute.xlu0 %19
    %vm21 = vcmask 786048
    %22 = vst.msk [vmem:[#allocation0] sm:$0x1] %vm21, %v20
    %s23 = scalar_lea.vmem %s0, 4
    %v24 = vld [vmem:[%s23] sm:$0x1]
    %25 = vrot.lane.b32.xlu0 %v24, 64
    %v26 = vpop.permute.xlu0 %25
    %vm27 = vcmask 654848
    %28 = vst.msk [vmem:[#allocation0] sm:$0x1] %vm27, %v26
    %s29 = scalar_lea.vmem %s0, 3
    %v30 = vld [vmem:[%s29] sm:$0x1]
    %31 = vrot.lane.b32.xlu0 %v30, 48
    %v32 = vpop.permute.xlu0 %31
    %vm33 = vcmask 523648
    %34 = vst.msk [vmem:[#allocation0] sm:$0x1] %vm33, %v32
    %s35 = scalar_lea.vmem %s0, 2
    %v36 = vld [vmem:[%s35] sm:$0x1]
    %37 = vrot.lane.b32.xlu0 %v36, 32
    %v38 = vpop.permute.xlu0 %37
    %vm39 = vcmask 392448
    %40 = vst.msk [vmem:[#allocation0] sm:$0x1] %vm39, %v38
    %s41 = scalar_lea.vmem %s0, 1
    %v42 = vld [vmem:[%s41] sm:$0x1]
    %43 = vrot.lane.b32.xlu0 %v42, 16
    %v44 = vpop.permute.xlu0 %43
    %vm45 = vcmask 261248
    %46 = vst.msk [vmem:[#allocation0] sm:$0x1] %vm45, %v44
    %s48 = sshllo.u32 0, 1
    %v50 = vld [vmem:[#allocation0] sm:%s48]
    %s51 = sshllo.u32 0, 1
    %52 = vst [vmem:[%s1] sm:%s51] %v50

// kernel: custom_bn_forward.1
$region0: #{custom_bn_forward.1}
  #allocation0 [shape = 'u32[]', space=smem, size = 0x4, offset = 0x4, fixed_abs, tag = 'smem constant byte address 0x4 - core index']
  #allocation1 [shape = 'u32[144,128]{1,0:T(1,128)}', space=vmem, size = 0x12000, scoped, tag = 'internal scratch']
  %s0 = inlined_call_operand.vmem [shape: f32[16,128], index: 0, kind: input, shape index: {}]
  %s1 = inlined_call_operand.vmem [shape: f32[1,128], index: 1, kind: input, shape index: {}]
  %s2 = inlined_call_operand.vmem [shape: f32[1,128], index: 2, kind: input, shape index: {}]
  %s3 = inlined_call_operand.vmem [shape: f32[16,128], index: 3, kind: output, shape index: {0}]
  %s4 = inlined_call_operand.vmem [shape: f32[1,2,128], index: 4, kind: output, shape index: {1}]
  %5 = xla_tuple %s3, %s4
  %s6 = sld [smem:[#allocation0]]
  $region30: #{custom_bn_forward.1} parent=0
    _
  %s8 = ssub.s32 1, %s6
  %s9 = scalar_select 0, %s8, %s6
  // Predicated region
  $region2: #{custom_bn_forward.1} parent=0 // pred_check
    _
  $region3: #{custom_bn_forward.1} parent=0 // pred_check_branch
    %11 = sbr.rel (0) target = $region5
  $region4: #{custom_bn_forward.1} parent=0 // pred_region
    _
  $region5: #{custom_bn_forward.1} parent=0 // pred_fallthru
    _
  // Predicated region
  $region6: #{custom_bn_forward.1} parent=0 // pred_check
    _
  $region7: #{custom_bn_forward.1} parent=0 // pred_check_branch
    %13 = sbr.rel (0) target = $region9
  $region8: #{custom_bn_forward.1} parent=0 // pred_region
    _
  $region9: #{custom_bn_forward.1} parent=0 // pred_fallthru
    _
  // Predicated region
  $region10: #{custom_bn_forward.1} parent=0 // pred_check
    _
  $region11: #{custom_bn_forward.1} parent=0 // pred_check_branch
    %15 = sbr.rel (0) target = $region13
  $region12: #{custom_bn_forward.1} parent=0 // pred_region
    _
  $region13: #{custom_bn_forward.1} parent=0 // pred_fallthru
    _
  %v16 = vld [vmem:[%s0] sm:$0xff]
  %v17 = vld [vmem:[%s0 + $0x8] sm:$0xff]
  %v18 = vld [vmem:[%s1] sm:$0x1]
  %v19 = vld [vmem:[%s2] sm:$0x1]
  %v21 = vlaneseq
  %v22 = vshrl.u32 %v21, 7
  %v23 = vsub.s32 0, %v22
  %v24 = vrot.slane %v18, %v23
  %v26 = vsub.f32 %v16, %v24
  %v27 = vsub.f32 %v17, %v24
  %v29 = vlaneseq
  %v30 = vshrl.u32 %v29, 7
  %v31 = vsub.s32 0, %v30
  %v32 = vrot.slane %v19, %v31
  %v34 = vmul.f32 %v26, %v32
  %v35 = vmul.f32 %v27, %v32
  %36 = vst [vmem:[%s3] sm:$0xff] %v34
  %37 = vst [vmem:[%s3 + $0x8] sm:$0xff] %v35
  %v38 = vadd.f32 %v16, %v17
  %v39 = vrot.slane %v38, 4
  %v40 = vadd.f32 %v38, %v39
  %v41 = vrot.slane %v40, 2
  %v42 = vadd.f32 %v40, %v41
  %v43 = vrot.slane %v42, 1
  %v44 = vadd.f32 %v42, %v43
  %v45 = vmul.f32 %v16, %v16
  %v46 = vmul.f32 %v17, %v17
  %v47 = vadd.f32 %v45, %v46
  %v48 = vrot.slane %v47, 4
  %v49 = vadd.f32 %v47, %v48
  %v50 = vrot.slane %v49, 2
  %v51 = vadd.f32 %v49, %v50
  %v52 = vrot.slane %v51, 1
  %v53 = vadd.f32 %v51, %v52
  %vm54 = vcmask 1040384
  %v55 = vsel %vm54, %v44, %v53
  %56 = vst [vmem:[%s4] sm:$0x3] %v55
  // Predicated region
  $region14: #{custom_bn_forward.1} parent=0 // pred_check
    _
  $region15: #{custom_bn_forward.1} parent=0 // pred_check_branch
    %58 = sbr.rel (0) target = $region17
  $region16: #{custom_bn_forward.1} parent=0 // pred_region
    _
  $region17: #{custom_bn_forward.1} parent=0 // pred_fallthru
    _
  // Predicated region
  $region18: #{custom_bn_forward.1} parent=0 // pred_check
    _
  $region19: #{custom_bn_forward.1} parent=0 // pred_check_branch
    %60 = sbr.rel (0) target = $region21
  $region20: #{custom_bn_forward.1} parent=0 // pred_region
    _
  $region21: #{custom_bn_forward.1} parent=0 // pred_fallthru
    _
  // Predicated region
  $region22: #{custom_bn_forward.1} parent=0 // pred_check
    _
  $region23: #{custom_bn_forward.1} parent=0 // pred_check_branch
    %62 = sbr.rel (0) target = $region25
  $region24: #{custom_bn_forward.1} parent=0 // pred_region
    _
  $region25: #{custom_bn_forward.1} parent=0 // pred_fallthru
    _
  // Predicated region
  $region26: #{custom_bn_forward.1} parent=0 // pred_check
    _
  $region27: #{custom_bn_forward.1} parent=0 // pred_check_branch
    %64 = sbr.rel (0) target = $region29
  $region28: #{custom_bn_forward.1} parent=0 // pred_region
    _
  $region29: #{custom_bn_forward.1} parent=0 // pred_fallthru
    _

</llo_original>
